<compile_context>
chip_gen: v5e
topology: v5e:2x2
jax: 0.10.0
libtpu: 0.0.40
codegen_flags: <defaults>
</compile_context>

<pallas_src>
from functools import partial

import jax
import jax.numpy as jnp
from jax.experimental import pallas as pl
from jax.experimental.pallas import tpu as pltpu


def wireless_gnn_kernel(x_ref, w1_ref, b1_ref, w2_ref, b2_ref,
                        w3_ref, b3_ref, wfc_ref, bfc_ref, out_ref):
    # x_ref: (C_in, TN) bf16 tile of node features, nodes on lanes.
    # Weights: bf16 (C_out, C_in); biases: f32 (C_out, 1).
    # Hidden activations stay f32 (bf16 only on x / weights).
    x = x_ref[...]
    h = jnp.dot(w1_ref[...], x, preferred_element_type=jnp.float32)
    h = jnp.maximum(h + b1_ref[...], 0.0)                       # relu(conv1)
    h = jnp.dot(w2_ref[...], h, preferred_element_type=jnp.float32)
    h = jnp.maximum(h + b2_ref[...], 0.0)                       # relu(conv2)
    h = jnp.dot(w3_ref[...], h, preferred_element_type=jnp.float32)
    h = jnp.maximum(h + b3_ref[...], 0.0)                       # relu(conv3)
    o = jnp.dot(wfc_ref[...], h, preferred_element_type=jnp.float32)
    out_ref[...] = (o + bfc_ref[...]).astype(out_ref.dtype)     # fc


def _round_up(v, m):
    return ((v + m - 1) // m) * m


@partial(jax.jit, static_argnames=("tile_n",))
def _forward(x, params, *, tile_n):
    w1, b1, w2, b2, w3, b3, wfc, bfc = params
    N, c_in = x.shape
    fc_out = wfc.shape[0]

    # Lane axis = nodes.  256-lane alignment feeds the 256-wide v6e/v7x MXU
    # (and is a multiple of 128 for v5e); cap at the padded node count so tiny
    # graphs run in a single grid step.
    lane_align = 256
    tile_n = max(lane_align, (tile_n // lane_align) * lane_align)
    n_min = _round_up(N, lane_align)
    tile_n = min(tile_n, n_min)
    # v7x: keep >= 2 grid steps on large graphs so both TensorCores get work
    # and per-step VMEM stays bounded under the 64 MiB budget.
    if n_min > 8192 and 2 * tile_n > n_min:
        tile_n = max(lane_align, _round_up(n_min // 2, lane_align))
    n_pad = _round_up(N, tile_n)

    # (N, C_in) f32 -> zero-padded, transposed, bf16 (C_in, N_pad).
    # Under jit this pad/.T/astype fuses into a single HBM copy feeding the
    # pallas_call instead of separate eager dispatches.
    xt = jnp.pad(x, ((0, n_pad - N), (0, 0))).T.astype(jnp.bfloat16)

    grid = (n_pad // tile_n,)
    full = lambda a: pl.BlockSpec(a.shape, lambda i: (0, 0))

    out_t = pl.pallas_call(
        wireless_gnn_kernel,
        out_shape=jax.ShapeDtypeStruct((fc_out, n_pad), jnp.float32),
        grid=grid,
        in_specs=[
            pl.BlockSpec((c_in, tile_n), lambda i: (0, i)),   # x tile
            full(w1), full(b1),                               # conv1 W, b
            full(w2), full(b2),                               # conv2 W, b
            full(w3), full(b3),                               # conv3 W, b
            full(wfc), full(bfc),                             # fc W, b
        ],
        out_specs=pl.BlockSpec((fc_out, tile_n), lambda i: (0, i)),
        compiler_params=pltpu.CompilerParams(
            dimension_semantics=("parallel",),
            vmem_limit_bytes=32 * 1024 * 1024),
    )(xt, w1, b1, w2, b2, w3, b3, wfc, bfc)

    # (fc_out, N_pad) -> (N, fc_out); stays inside the same jit (no extra
    # dispatch, pad lanes with relu(bias) garbage are sliced off here).
    return out_t[:, :N].T


def wireless_gnn_forward(x, edge_index, params, *, tile_n=16384):
    """x: (N, C_in) f32 node features. Returns (N, 2) f32."""
    # edge_index is unused, exactly as in the reference PyTorch forward.
    # TODO(synk): if real message passing over edge_index is added later, the
    # pure lanes=nodes layout (and unmasked padded tail lanes) must change.
    del edge_index
    return _forward(x, params, tile_n=tile_n)


def init_params(key, in_channels, hidden_channels, out_channels):
    """Deterministic synthetic f32 params in PyTorch layout: W (C_out, C_in), b (C_out, 1)."""
    ks = jax.random.split(key, 8)

    def u(k, shape, fan_in):
        bound = 1.0 / jnp.sqrt(fan_in)
        return jax.random.uniform(k, shape, jnp.float32, -bound, bound)

    w1 = u(ks[0], (hidden_channels, in_channels), in_channels)
    b1 = u(ks[1], (hidden_channels, 1), in_channels)
    w2 = u(ks[2], (hidden_channels, hidden_channels), hidden_channels)
    b2 = u(ks[3], (hidden_channels, 1), hidden_channels)
    w3 = u(ks[4], (out_channels, hidden_channels), hidden_channels)
    b3 = u(ks[5], (out_channels, 1), hidden_channels)
    wfc = u(ks[6], (2, out_channels), out_channels)
    bfc = u(ks[7], (2, 1), out_channels)
    return (w1, b1, w2, b2, w3, b3, wfc, bfc)


def prepare_params(params):
    """One-time cast hoisted out of the forward: weights -> bf16, biases stay f32."""
    w1, b1, w2, b2, w3, b3, wfc, bfc = params
    bf = jnp.bfloat16
    return (w1.astype(bf), b1, w2.astype(bf), b2,
            w3.astype(bf), b3, wfc.astype(bf), bfc)


def reference_forward(x, params):
    """Pure-JAX f32 reference in the natural (N, C) layout."""
    w1, b1, w2, b2, w3, b3, wfc, bfc = params
    h = jnp.maximum(x @ w1.T + b1.T, 0.0)
    h = jnp.maximum(h @ w2.T + b2.T, 0.0)
    h = jnp.maximum(h @ w3.T + b3.T, 0.0)
    return h @ wfc.T + bfc.T


if __name__ == "__main__":
    key = jax.random.PRNGKey(0)
    k_x, k_p = jax.random.split(key)

    # Small shapes: 16 nodes, in=4 features, hidden=32, out=16 channels.
    N, C_IN, HID, C_OUT = 16, 4, 32, 16
    x = jax.random.normal(k_x, (N, C_IN), jnp.float32)
    # dummy edge_index (unused by the forward pass, kept for signature parity)
    edge_index = jnp.zeros((2, 8), dtype=jnp.int32)

    params_f32 = init_params(k_p, C_IN, HID, C_OUT)
    params = prepare_params(params_f32)   # bf16 weight cast done once, not per call

    out = wireless_gnn_forward(x, edge_index, params)
    out = jax.block_until_ready(out)

    ref = reference_forward(x, params_f32)
    assert out.shape == (N, 2)
    # bf16 x / weights against the f32 reference -> loose tolerance.
    err = jnp.max(jnp.abs(out - ref))
    assert jnp.allclose(out, ref, atol=2e-2, rtol=2e-2), f"max abs err {err}"

    print("KERNEL_OK")
</pallas_src>

<mosaic_0001>
module attributes {stable_mosaic.version = 11 : i64} {
  func.func @wireless_gnn_kernel(%arg0: i32, %arg1: memref<4x256xbf16, #tpu.memory_space<vmem>>, %arg2: memref<32x4xbf16, #tpu.memory_space<vmem>>, %arg3: memref<32x1xf32, #tpu.memory_space<vmem>>, %arg4: memref<32x32xbf16, #tpu.memory_space<vmem>>, %arg5: memref<32x1xf32, #tpu.memory_space<vmem>>, %arg6: memref<16x32xbf16, #tpu.memory_space<vmem>>, %arg7: memref<16x1xf32, #tpu.memory_space<vmem>>, %arg8: memref<2x16xbf16, #tpu.memory_space<vmem>>, %arg9: memref<2x1xf32, #tpu.memory_space<vmem>>, %arg10: memref<2x256xf32, #tpu.memory_space<vmem>>) attributes {dimension_semantics = [#tpu.dimension_semantics<parallel>], iteration_bounds = array<i64: 1>, scalar_prefetch = 0 : i64, scratch_operands = 0 : i64, tpu.core_type = #tpu.core_type<tc>, window_params = [{transform_indices = @transform_0, window_bounds = array<i64: 4, 256>}, {pipeline_mode = #tpu.pipeline_mode<synchronous>, transform_indices = @transform_1, window_bounds = array<i64: 32, 4>}, {pipeline_mode = #tpu.pipeline_mode<synchronous>, transform_indices = @transform_2, window_bounds = array<i64: 32, 1>}, {pipeline_mode = #tpu.pipeline_mode<synchronous>, transform_indices = @transform_3, window_bounds = array<i64: 32, 32>}, {pipeline_mode = #tpu.pipeline_mode<synchronous>, transform_indices = @transform_4, window_bounds = array<i64: 32, 1>}, {pipeline_mode = #tpu.pipeline_mode<synchronous>, transform_indices = @transform_5, window_bounds = array<i64: 16, 32>}, {pipeline_mode = #tpu.pipeline_mode<synchronous>, transform_indices = @transform_6, window_bounds = array<i64: 16, 1>}, {pipeline_mode = #tpu.pipeline_mode<synchronous>, transform_indices = @transform_7, window_bounds = array<i64: 2, 16>}, {pipeline_mode = #tpu.pipeline_mode<synchronous>, transform_indices = @transform_8, window_bounds = array<i64: 2, 1>}, {transform_indices = @transform_9, window_bounds = array<i64: 2, 256>}]} {
    %c0 = arith.constant 0 : index
    %c0_0 = arith.constant 0 : index
    %0 = vector.load %arg1[%c0, %c0_0] : memref<4x256xbf16, #tpu.memory_space<vmem>>, vector<4x256xbf16>
    %c0_1 = arith.constant 0 : index
    %c0_2 = arith.constant 0 : index
    %1 = vector.load %arg2[%c0_1, %c0_2] : memref<32x4xbf16, #tpu.memory_space<vmem>>, vector<32x4xbf16>
    %cst = arith.constant dense<0.000000e+00> : vector<32x256xf32>
    %2 = tpu.matmul %1, %0, %cst {dimension_numbers = #tpu.dot_dimension_numbers<[1], [0], [0], [1], [0, 0, 1, 1], [], []>} : vector<32x4xbf16>, vector<4x256xbf16>, vector<32x256xf32> -> vector<32x256xf32>
    %c0_3 = arith.constant 0 : index
    %c0_4 = arith.constant 0 : index
    %3 = vector.load %arg3[%c0_3, %c0_4] : memref<32x1xf32, #tpu.memory_space<vmem>>, vector<32x1xf32>
    %4 = vector.broadcast %3 : vector<32x1xf32> to vector<32x256xf32>
    %5 = arith.addf %2, %4 : vector<32x256xf32>
    %cst_5 = arith.constant 0.000000e+00 : f32
    %6 = vector.broadcast %cst_5 : f32 to vector<32x256xf32>
    %7 = arith.maximumf %5, %6 : vector<32x256xf32>
    %c0_6 = arith.constant 0 : index
    %c0_7 = arith.constant 0 : index
    %8 = vector.load %arg4[%c0_6, %c0_7] : memref<32x32xbf16, #tpu.memory_space<vmem>>, vector<32x32xbf16>
    %cst_8 = arith.constant dense<0.000000e+00> : vector<32x256xf32>
    %9 = tpu.matmul %8, %7, %cst_8 {dimension_numbers = #tpu.dot_dimension_numbers<[1], [0], [0], [1], [0, 0, 1, 1], [], []>} : vector<32x32xbf16>, vector<32x256xf32>, vector<32x256xf32> -> vector<32x256xf32>
    %c0_9 = arith.constant 0 : index
    %c0_10 = arith.constant 0 : index
    %10 = vector.load %arg5[%c0_9, %c0_10] : memref<32x1xf32, #tpu.memory_space<vmem>>, vector<32x1xf32>
    %11 = vector.broadcast %10 : vector<32x1xf32> to vector<32x256xf32>
    %12 = arith.addf %9, %11 : vector<32x256xf32>
    %cst_11 = arith.constant 0.000000e+00 : f32
    %13 = vector.broadcast %cst_11 : f32 to vector<32x256xf32>
    %14 = arith.maximumf %12, %13 : vector<32x256xf32>
    %c0_12 = arith.constant 0 : index
    %c0_13 = arith.constant 0 : index
    %15 = vector.load %arg6[%c0_12, %c0_13] : memref<16x32xbf16, #tpu.memory_space<vmem>>, vector<16x32xbf16>
    %cst_14 = arith.constant dense<0.000000e+00> : vector<16x256xf32>
    %16 = tpu.matmul %15, %14, %cst_14 {dimension_numbers = #tpu.dot_dimension_numbers<[1], [0], [0], [1], [0, 0, 1, 1], [], []>} : vector<16x32xbf16>, vector<32x256xf32>, vector<16x256xf32> -> vector<16x256xf32>
    %c0_15 = arith.constant 0 : index
    %c0_16 = arith.constant 0 : index
    %17 = vector.load %arg7[%c0_15, %c0_16] : memref<16x1xf32, #tpu.memory_space<vmem>>, vector<16x1xf32>
    %18 = vector.broadcast %17 : vector<16x1xf32> to vector<16x256xf32>
    %19 = arith.addf %16, %18 : vector<16x256xf32>
    %cst_17 = arith.constant 0.000000e+00 : f32
    %20 = vector.broadcast %cst_17 : f32 to vector<16x256xf32>
    %21 = arith.maximumf %19, %20 : vector<16x256xf32>
    %c0_18 = arith.constant 0 : index
    %c0_19 = arith.constant 0 : index
    %22 = vector.load %arg8[%c0_18, %c0_19] : memref<2x16xbf16, #tpu.memory_space<vmem>>, vector<2x16xbf16>
    %cst_20 = arith.constant dense<0.000000e+00> : vector<2x256xf32>
    %23 = tpu.matmul %22, %21, %cst_20 {dimension_numbers = #tpu.dot_dimension_numbers<[1], [0], [0], [1], [0, 0, 1, 1], [], []>} : vector<2x16xbf16>, vector<16x256xf32>, vector<2x256xf32> -> vector<2x256xf32>
    %c0_21 = arith.constant 0 : index
    %c0_22 = arith.constant 0 : index
    %24 = vector.load %arg9[%c0_21, %c0_22] : memref<2x1xf32, #tpu.memory_space<vmem>>, vector<2x1xf32>
    %25 = vector.broadcast %24 : vector<2x1xf32> to vector<2x256xf32>
    %26 = arith.addf %23, %25 : vector<2x256xf32>
    %c0_23 = arith.constant 0 : index
    %c0_24 = arith.constant 0 : index
    %27 = vector.load %arg10[%c0_23, %c0_24] : memref<2x256xf32, #tpu.memory_space<vmem>>, vector<2x256xf32>
    tpu.vector_store %arg10[%c0_23, %c0_24], %26 {strides = array<i32>} : memref<2x256xf32, #tpu.memory_space<vmem>>, vector<2x256xf32>,
    return
  }
  func.func @transform_0(%arg0: i32) -> (i32, i32) {
    %c0_i32 = arith.constant 0 : i32
    %c0_i32_0 = arith.constant 0 : i32
    return %c0_i32, %arg0 : i32, i32
  }
  func.func @transform_1(%arg0: i32) -> (i32, i32) {
    %c0_i32 = arith.constant 0 : i32
    %c0_i32_0 = arith.constant 0 : i32
    %c0_i32_1 = arith.constant 0 : i32
    return %c0_i32, %c0_i32_0 : i32, i32
  }
  func.func @transform_2(%arg0: i32) -> (i32, i32) {
    %c0_i32 = arith.constant 0 : i32
    %c0_i32_0 = arith.constant 0 : i32
    %c0_i32_1 = arith.constant 0 : i32
    return %c0_i32, %c0_i32_0 : i32, i32
  }
  func.func @transform_3(%arg0: i32) -> (i32, i32) {
    %c0_i32 = arith.constant 0 : i32
    %c0_i32_0 = arith.constant 0 : i32
    %c0_i32_1 = arith.constant 0 : i32
    return %c0_i32, %c0_i32_0 : i32, i32
  }
  func.func @transform_4(%arg0: i32) -> (i32, i32) {
    %c0_i32 = arith.constant 0 : i32
    %c0_i32_0 = arith.constant 0 : i32
    %c0_i32_1 = arith.constant 0 : i32
    return %c0_i32, %c0_i32_0 : i32, i32
  }
  func.func @transform_5(%arg0: i32) -> (i32, i32) {
    %c0_i32 = arith.constant 0 : i32
    %c0_i32_0 = arith.constant 0 : i32
    %c0_i32_1 = arith.constant 0 : i32
    return %c0_i32, %c0_i32_0 : i32, i32
  }
  func.func @transform_6(%arg0: i32) -> (i32, i32) {
    %c0_i32 = arith.constant 0 : i32
    %c0_i32_0 = arith.constant 0 : i32
    %c0_i32_1 = arith.constant 0 : i32
    return %c0_i32, %c0_i32_0 : i32, i32
  }
  func.func @transform_7(%arg0: i32) -> (i32, i32) {
    %c0_i32 = arith.constant 0 : i32
    %c0_i32_0 = arith.constant 0 : i32
    %c0_i32_1 = arith.constant 0 : i32
    return %c0_i32, %c0_i32_0 : i32, i32
  }
  func.func @transform_8(%arg0: i32) -> (i32, i32) {
    %c0_i32 = arith.constant 0 : i32
    %c0_i32_0 = arith.constant 0 : i32
    %c0_i32_1 = arith.constant 0 : i32
    return %c0_i32, %c0_i32_0 : i32, i32
  }
  func.func @transform_9(%arg0: i32) -> (i32, i32) {
    %c0_i32 = arith.constant 0 : i32
    %c0_i32_0 = arith.constant 0 : i32
    return %c0_i32, %arg0 : i32, i32
  }
}

</mosaic_0001>

<llo_original>
// kernel: _forward.1
$region0: #{_forward.1}
  #allocation0 [shape = 'u32[]', space=smem, size = 0x4, offset = 0x4, fixed_abs, tag = 'smem constant byte address 0x4 - core index']
  #allocation1 [shape = 'u32[72,128]{1,0:T(1,128)}', space=vmem, size = 0x9000, scoped, tag = 'internal scratch']
  %s0 = inlined_call_operand.vmem [shape: bf16[4,256], index: 0, kind: input, shape index: {}]
  %s1 = inlined_call_operand.vmem [shape: bf16[32,4], index: 1, kind: input, shape index: {}]
  %s2 = inlined_call_operand.vmem [shape: f32[32,1], index: 2, kind: input, shape index: {}]
  %s3 = inlined_call_operand.vmem [shape: bf16[32,32], index: 3, kind: input, shape index: {}]
  %s4 = inlined_call_operand.vmem [shape: f32[32,1], index: 4, kind: input, shape index: {}]
  %s5 = inlined_call_operand.vmem [shape: bf16[16,32], index: 5, kind: input, shape index: {}]
  %s6 = inlined_call_operand.vmem [shape: f32[16,1], index: 6, kind: input, shape index: {}]
  %s7 = inlined_call_operand.vmem [shape: bf16[2,16], index: 7, kind: input, shape index: {}]
  %s8 = inlined_call_operand.vmem [shape: f32[2,1], index: 8, kind: input, shape index: {}]
  %s9 = inlined_call_operand.vmem [shape: f32[2,256], index: 9, kind: output, shape index: {}]
  %s10 = sld [smem:[#allocation0]]
  $region46: #{_forward.1} parent=0
    _
  %s12 = ssub.s32 1, %s10
  %s13 = scalar_select 0, %s12, %s10
  // Predicated region
  $region2: #{_forward.1} parent=0 // pred_check
    _
  $region3: #{_forward.1} parent=0 // pred_check_branch
    %15 = sbr.rel (0) target = $region5
  $region4: #{_forward.1} parent=0 // pred_region
    _
  $region5: #{_forward.1} parent=0 // pred_fallthru
    _
  // Predicated region
  $region6: #{_forward.1} parent=0 // pred_check
    _
  $region7: #{_forward.1} parent=0 // pred_check_branch
    %17 = sbr.rel (0) target = $region9
  $region8: #{_forward.1} parent=0 // pred_region
    _
  $region9: #{_forward.1} parent=0 // pred_fallthru
    _
  // Predicated region
  $region10: #{_forward.1} parent=0 // pred_check
    _
  $region11: #{_forward.1} parent=0 // pred_check_branch
    %19 = sbr.rel (0) target = $region13
  $region12: #{_forward.1} parent=0 // pred_region
    _
  $region13: #{_forward.1} parent=0 // pred_fallthru
    _
  // Predicated region
  $region14: #{_forward.1} parent=0 // pred_check
    _
  $region15: #{_forward.1} parent=0 // pred_check_branch
    %21 = sbr.rel (0) target = $region17
  $region16: #{_forward.1} parent=0 // pred_region
    _
  $region17: #{_forward.1} parent=0 // pred_fallthru
    _
  // Predicated region
  $region18: #{_forward.1} parent=0 // pred_check
    _
  $region19: #{_forward.1} parent=0 // pred_check_branch
    %23 = sbr.rel (0) target = $region21
  $region20: #{_forward.1} parent=0 // pred_region
    _
  $region21: #{_forward.1} parent=0 // pred_fallthru
    _
  // Predicated region
  $region22: #{_forward.1} parent=0 // pred_check
    _
  $region23: #{_forward.1} parent=0 // pred_check_branch
    %25 = sbr.rel (0) target = $region25
  $region24: #{_forward.1} parent=0 // pred_region
    _
  $region25: #{_forward.1} parent=0 // pred_fallthru
    _
  // Predicated region
  $region26: #{_forward.1} parent=0 // pred_check
    _
  $region27: #{_forward.1} parent=0 // pred_check_branch
    %27 = sbr.rel (0) target = $region29
  $region28: #{_forward.1} parent=0 // pred_region
    _
  $region29: #{_forward.1} parent=0 // pred_fallthru
    _
  // Predicated region
  $region30: #{_forward.1} parent=0 // pred_check
    _
  $region31: #{_forward.1} parent=0 // pred_check_branch
    %29 = sbr.rel (0) target = $region33
  $region32: #{_forward.1} parent=0 // pred_region
    _
  $region33: #{_forward.1} parent=0 // pred_fallthru
    _
  // Predicated region
  $region34: #{_forward.1} parent=0 // pred_check
    _
  $region35: #{_forward.1} parent=0 // pred_check_branch
    %31 = sbr.rel (0) target = $region37
  $region36: #{_forward.1} parent=0 // pred_region
    _
  $region37: #{_forward.1} parent=0 // pred_fallthru
    _
  %v33 = vld [vmem:[%s0] sm:$0xf]
  %v34 = vld [vmem:[%s1] sm:$0xf]
  %v35 = vld [vmem:[%s1 + $0x4] sm:$0xf]
  %v36 = vld [vmem:[%s1 + $0x8] sm:$0xf]
  %v37 = vld [vmem:[%s1 + $0xc] sm:$0xf]
  %v38 = vld [vmem:[%s2] sm:$0xff]
  %v39 = vld [vmem:[%s2 + $0x8] sm:$0xff]
  %v40 = vld [vmem:[%s2 + $0x10] sm:$0xff]
  %v41 = vld [vmem:[%s2 + $0x18] sm:$0xff]
  %43 = vset.pattern.permute.xlu0 0
  %44 = vperm.xlu0 %43, %v38
  %v45 = vpop.permute.xlu0 %44
  %48 = vset.pattern.permute.xlu0 0
  %49 = vperm.xlu0 %48, %v39
  %v50 = vpop.permute.xlu0 %49
  %53 = vset.pattern.permute.xlu0 0
  %54 = vperm.xlu0 %53, %v40
  %v55 = vpop.permute.xlu0 %54
  %58 = vset.pattern.permute.xlu0 0
  %59 = vperm.xlu0 %58, %v41
  %v60 = vpop.permute.xlu0 %59
  %v66 = vunpack.c.l.b16 %v34
  %v67 = vunpack.c.l.b16 %v35
  %v68 = vunpack.c.l.b16 %v36
  %v69 = vunpack.c.l.b16 %v37
  %v70 = vpack.c.b16 %v67, %v66
  %v71 = vpack.c.b16 %v69, %v68
  %73 = vst [vmem:[#allocation1] ss:$4 sm:$0xff] %v33
  %v74 = vld.sshfl [vmem:[#allocation1] sm:$0xff pattern:$0x73625140]
  %v75 = vld.sshfl [vmem:[#allocation1 + $0x8] sm:$0xff pattern:$0x73625140]
  %vm76 = vcmask 31744
  %v78 = vsel %vm76, %v70, 0
  %v81 = vsel %vm76, %v71, 0
  %vm83 = vcmask 1041408
  %v84 = vsel %vm83, %v74, 0
  %v86 = vsel %vm83, %v75, 0
  %88 = vmatpush.bf16.msra.mxu0 0
  %89 = vmatpush.bf16.msra.mxu0 0
  %90 = vmatpush.bf16.msra.mxu0 0
  %91 = vmatpush.bf16.msra.mxu0 0
  %92 = vmatpush.bf16.msra.mxu0 0
  %93 = vmatpush.bf16.msra.mxu0 0
  %94 = vmatpush.bf16.msra.mxu0 0
  %95 = vmatpush.bf16.msra.mxu0 %v84
  %96 = vmatmul.bf16.gmra.mxu0 %v78
  %v97 = vpop.f32.mrf.mxu0
  %v98 = vadd.f32 %v45, %v97
  %v99 = vpop.f32.mrf.mxu0
  %v100 = vadd.f32 %v50, %v99
  %101 = vmatmul.bf16.gmra.mxu0 %v81
  %v102 = vpop.f32.mrf.mxu0
  %v103 = vadd.f32 %v55, %v102
  %v104 = vpop.f32.mrf.mxu0
  %v105 = vadd.f32 %v60, %v104
  %106 = vdwg.mxu0
  %107 = vmatpush.bf16.msra.mxu0 0
  %108 = vmatpush.bf16.msra.mxu0 0
  %109 = vmatpush.bf16.msra.mxu0 0
  %110 = vmatpush.bf16.msra.mxu0 0
  %111 = vmatpush.bf16.msra.mxu0 0
  %112 = vmatpush.bf16.msra.mxu0 0
  %113 = vmatpush.bf16.msra.mxu0 0
  %114 = vmatpush.bf16.msra.mxu0 %v86
  %115 = vmatmul.bf16.gmra.mxu0 %v78
  %v116 = vpop.f32.mrf.mxu0
  %v117 = vadd.f32 %v45, %v116
  %v118 = vpop.f32.mrf.mxu0
  %v119 = vadd.f32 %v50, %v118
  %120 = vmatmul.bf16.gmra.mxu0 %v81
  %v121 = vpop.f32.mrf.mxu0
  %v122 = vadd.f32 %v55, %v121
  %v123 = vpop.f32.mrf.mxu0
  %v124 = vadd.f32 %v60, %v123
  %125 = vdwg.mxu0
  %v126 = vmax.f32 %v98, 0.0
  %v127 = vmax.f32 %v117, 0.0
  %v128 = vmax.f32 %v100, 0.0
  %v129 = vmax.f32 %v119, 0.0
  %v130 = vmax.f32 %v103, 0.0
  %v131 = vmax.f32 %v122, 0.0
  %v132 = vmax.f32 %v105, 0.0
  %v133 = vmax.f32 %v124, 0.0
  %v134 = vld [vmem:[%s3] sm:$0xf]
  %v135 = vld [vmem:[%s3 + $0x4] sm:$0xf]
  %v136 = vld [vmem:[%s3 + $0x8] sm:$0xf]
  %v137 = vld [vmem:[%s3 + $0xc] sm:$0xf]
  %v138 = vld [vmem:[%s4] sm:$0xff]
  %v139 = vld [vmem:[%s4 + $0x8] sm:$0xff]
  %v140 = vld [vmem:[%s4 + $0x10] sm:$0xff]
  %v141 = vld [vmem:[%s4 + $0x18] sm:$0xff]
  %143 = vset.pattern.permute.xlu0 0
  %144 = vperm.xlu0 %143, %v138
  %v145 = vpop.permute.xlu0 %144
  %148 = vset.pattern.permute.xlu0 0
  %149 = vperm.xlu0 %148, %v139
  %v150 = vpop.permute.xlu0 %149
  %153 = vset.pattern.permute.xlu0 0
  %154 = vperm.xlu0 %153, %v140
  %v155 = vpop.permute.xlu0 %154
  %158 = vset.pattern.permute.xlu0 0
  %159 = vperm.xlu0 %158, %v141
  %v160 = vpop.permute.xlu0 %159
  %v166 = vunpack.c.l.b16 %v134
  %v167 = vunpack.c.l.b16 %v135
  %v168 = vunpack.c.l.b16 %v136
  %v169 = vunpack.c.l.b16 %v137
  %v170 = vpack.c.b16 %v167, %v166
  %v171 = vpack.c.b16 %v169, %v168
  %vm172 = vcmask 261120
  %v174 = vsel %vm172, %v170, 0
  %v177 = vsel %vm172, %v171, 0
  %179 = vmatpush.msra.mxu0 0.0
  %180 = vmatpush.msra.mxu0 0.0
  %181 = vmatpush.msra.mxu0 0.0
  %182 = vmatpush.msra.mxu0 0.0
  %183 = vmatpush.msra.mxu0 0.0
  %184 = vmatpush.msra.mxu0 0.0
  %185 = vmatpush.msra.mxu0 0.0
  %186 = vmatpush.msra.mxu0 0.0
  %187 = vmatpush.msra.mxu0 0.0
  %188 = vmatpush.msra.mxu0 0.0
  %189 = vmatpush.msra.mxu0 0.0
  %190 = vmatpush.msra.mxu0 0.0
  %191 = vmatpush.msra.mxu0 %v132
  %192 = vmatpush.msra.mxu0 %v130
  %193 = vmatpush.msra.mxu0 %v128
  %194 = vmatpush.msra.mxu0 %v126
  %195 = vmatmul.bf16.gmra.mxu0 %v174
  %v196 = vpop.f32.mrf.mxu0
  %v197 = vadd.f32 %v145, %v196
  %v198 = vpop.f32.mrf.mxu0
  %v199 = vadd.f32 %v150, %v198
  %200 = vmatmul.bf16.gmra.mxu0 %v177
  %v201 = vpop.f32.mrf.mxu0
  %v202 = vadd.f32 %v155, %v201
  %v203 = vpop.f32.mrf.mxu0
  %v204 = vadd.f32 %v160, %v203
  %205 = vdwg.mxu0
  %206 = vmatpush.msra.mxu0 0.0
  %207 = vmatpush.msra.mxu0 0.0
  %208 = vmatpush.msra.mxu0 0.0
  %209 = vmatpush.msra.mxu0 0.0
  %210 = vmatpush.msra.mxu0 0.0
  %211 = vmatpush.msra.mxu0 0.0
  %212 = vmatpush.msra.mxu0 0.0
  %213 = vmatpush.msra.mxu0 0.0
  %214 = vmatpush.msra.mxu0 0.0
  %215 = vmatpush.msra.mxu0 0.0
  %216 = vmatpush.msra.mxu0 0.0
  %217 = vmatpush.msra.mxu0 0.0
  %218 = vmatpush.msra.mxu0 %v133
  %219 = vmatpush.msra.mxu0 %v131
  %220 = vmatpush.msra.mxu0 %v129
  %221 = vmatpush.msra.mxu0 %v127
  %222 = vmatmul.bf16.gmra.mxu0 %v174
  %v223 = vpop.f32.mrf.mxu0
  %v224 = vadd.f32 %v145, %v223
  %v225 = vpop.f32.mrf.mxu0
  %v226 = vadd.f32 %v150, %v225
  %227 = vmatmul.bf16.gmra.mxu0 %v177
  %v228 = vpop.f32.mrf.mxu0
  %v229 = vadd.f32 %v155, %v228
  %v230 = vpop.f32.mrf.mxu0
  %v231 = vadd.f32 %v160, %v230
  %232 = vdwg.mxu0
  %v233 = vmax.f32 %v197, 0.0
  %v234 = vmax.f32 %v224, 0.0
  %v235 = vmax.f32 %v199, 0.0
  %v236 = vmax.f32 %v226, 0.0
  %v237 = vmax.f32 %v202, 0.0
  %v238 = vmax.f32 %v229, 0.0
  %v239 = vmax.f32 %v204, 0.0
  %v240 = vmax.f32 %v231, 0.0
  %v241 = vld [vmem:[%s5] sm:$0xf]
  %v242 = vld [vmem:[%s5 + $0x4] sm:$0xf]
  %v243 = vld [vmem:[%s6] sm:$0xff]
  %v244 = vld [vmem:[%s6 + $0x8] sm:$0xff]
  %246 = vset.pattern.permute.xlu0 0
  %247 = vperm.xlu0 %246, %v243
  %v248 = vpop.permute.xlu0 %247
  %251 = vset.pattern.permute.xlu0 0
  %252 = vperm.xlu0 %251, %v244
  %v253 = vpop.permute.xlu0 %252
  %v257 = vunpack.c.l.b16 %v241
  %v258 = vunpack.c.l.b16 %v242
  %v259 = vpack.c.b16 %v258, %v257
  %v261 = vsel %vm172, %v259, 0
  %263 = vmatpush.msra.mxu0 0.0
  %264 = vmatpush.msra.mxu0 0.0
  %265 = vmatpush.msra.mxu0 0.0
  %266 = vmatpush.msra.mxu0 0.0
  %267 = vmatpush.msra.mxu0 0.0
  %268 = vmatpush.msra.mxu0 0.0
  %269 = vmatpush.msra.mxu0 0.0
  %270 = vmatpush.msra.mxu0 0.0
  %271 = vmatpush.msra.mxu0 0.0
  %272 = vmatpush.msra.mxu0 0.0
  %273 = vmatpush.msra.mxu0 0.0
  %274 = vmatpush.msra.mxu0 0.0
  %275 = vmatpush.msra.mxu0 %v239
  %276 = vmatpush.msra.mxu0 %v237
  %277 = vmatpush.msra.mxu0 %v235
  %278 = vmatpush.msra.mxu0 %v233
  %279 = vmatmul.bf16.gmra.mxu0 %v261
  %v280 = vpop.f32.mrf.mxu0
  %v281 = vadd.f32 %v248, %v280
  %v282 = vpop.f32.mrf.mxu0
  %v283 = vadd.f32 %v253, %v282
  %284 = vdwg.mxu0
  %285 = vmatpush.msra.mxu0 0.0
  %286 = vmatpush.msra.mxu0 0.0
  %287 = vmatpush.msra.mxu0 0.0
  %288 = vmatpush.msra.mxu0 0.0
  %289 = vmatpush.msra.mxu0 0.0
  %290 = vmatpush.msra.mxu0 0.0
  %291 = vmatpush.msra.mxu0 0.0
  %292 = vmatpush.msra.mxu0 0.0
  %293 = vmatpush.msra.mxu0 0.0
  %294 = vmatpush.msra.mxu0 0.0
  %295 = vmatpush.msra.mxu0 0.0
  %296 = vmatpush.msra.mxu0 0.0
  %297 = vmatpush.msra.mxu0 %v240
  %298 = vmatpush.msra.mxu0 %v238
  %299 = vmatpush.msra.mxu0 %v236
  %300 = vmatpush.msra.mxu0 %v234
  %301 = vmatmul.bf16.gmra.mxu0 %v261
  %v302 = vpop.f32.mrf.mxu0
  %v303 = vadd.f32 %v248, %v302
  %v304 = vpop.f32.mrf.mxu0
  %v305 = vadd.f32 %v253, %v304
  %306 = vdwg.mxu0
  %v307 = vmax.f32 %v281, 0.0
  %v308 = vmax.f32 %v303, 0.0
  %v309 = vmax.f32 %v283, 0.0
  %v310 = vmax.f32 %v305, 0.0
  %v311 = vld [vmem:[%s7] sm:$0x1]
  %v312 = vld [vmem:[%s8] sm:$0x3]
  %314 = vset.pattern.permute.xlu0 0
  %315 = vperm.xlu0 %314, %v312
  %v316 = vpop.permute.xlu0 %315
  %vm318 = vcmask 130048
  %v320 = vsel %vm318, %v311, 0
  %322 = vmatpush.msra.mxu0 0.0
  %323 = vmatpush.msra.mxu0 0.0
  %324 = vmatpush.msra.mxu0 0.0
  %325 = vmatpush.msra.mxu0 0.0
  %326 = vmatpush.msra.mxu0 0.0
  %327 = vmatpush.msra.mxu0 0.0
  %328 = vmatpush.msra.mxu0 0.0
  %329 = vmatpush.msra.mxu0 0.0
  %330 = vmatpush.msra.mxu0 0.0
  %331 = vmatpush.msra.mxu0 0.0
  %332 = vmatpush.msra.mxu0 0.0
  %333 = vmatpush.msra.mxu0 0.0
  %334 = vmatpush.msra.mxu0 0.0
  %335 = vmatpush.msra.mxu0 0.0
  %336 = vmatpush.msra.mxu0 %v309
  %337 = vmatpush.msra.mxu0 %v307
  %338 = vmatmul.bf16.gmra.mxu0 %v320
  %v339 = vpop.f32.mrf.mxu0
  %v340 = vadd.f32 %v316, %v339
  %v341 = vpop.f32.mrf.mxu0
  %342 = vdwg.mxu0
  %343 = vmatpush.msra.mxu0 0.0
  %344 = vmatpush.msra.mxu0 0.0
  %345 = vmatpush.msra.mxu0 0.0
  %346 = vmatpush.msra.mxu0 0.0
  %347 = vmatpush.msra.mxu0 0.0
  %348 = vmatpush.msra.mxu0 0.0
  %349 = vmatpush.msra.mxu0 0.0
  %350 = vmatpush.msra.mxu0 0.0
  %351 = vmatpush.msra.mxu0 0.0
  %352 = vmatpush.msra.mxu0 0.0
  %353 = vmatpush.msra.mxu0 0.0
  %354 = vmatpush.msra.mxu0 0.0
  %355 = vmatpush.msra.mxu0 0.0
  %356 = vmatpush.msra.mxu0 0.0
  %357 = vmatpush.msra.mxu0 %v310
  %358 = vmatpush.msra.mxu0 %v308
  %359 = vmatmul.bf16.gmra.mxu0 %v320
  %v360 = vpop.f32.mrf.mxu0
  %v361 = vadd.f32 %v316, %v360
  %v362 = vpop.f32.mrf.mxu0
  %363 = vdwg.mxu0
  %v366 = vrot.slane %v361, 6
  %v367 = vsel %vm83, %v340, %v366
  %369 = vst [vmem:[%s9] sm:$0xf] %v367
  // Predicated region
  $region38: #{_forward.1} parent=0 // pred_check
    _
  $region39: #{_forward.1} parent=0 // pred_check_branch
    %371 = sbr.rel (0) target = $region41
  $region40: #{_forward.1} parent=0 // pred_region
    _
  $region41: #{_forward.1} parent=0 // pred_fallthru
    _
  // Predicated region
  $region42: #{_forward.1} parent=0 // pred_check
    _
  $region43: #{_forward.1} parent=0 // pred_check_branch
    %373 = sbr.rel (0) target = $region45
  $region44: #{_forward.1} parent=0 // pred_region
    _
  $region45: #{_forward.1} parent=0 // pred_fallthru
    _

</llo_original>
